<compile_context>
chip_gen: v7x
topology: tpu7x:2x2x1
jax: 0.10.0
libtpu: 0.0.40
codegen_flags: <defaults>
</compile_context>

<pallas_src>
import functools

import jax
import jax.numpy as jnp
from jax.experimental import pallas as pl
from jax.experimental.pallas import tpu as pltpu


def _round_up(x, m):
    return ((x + m - 1) // m) * m


def _pick_tile(n, candidates):
    for c in candidates:
        if c <= n and n % c == 0:
            return c
    return n


_VMEM_LIMIT = 48 * 1024 * 1024  # safe on v7x (64 MiB), > default on v5e/v6e


# ---------------------------------------------------------------------------
# Kernel 1: fused feature transform
#   XW_all = X @ [W | W_res]  ->  xw (compute dtype), xres = X@W_res + b (f32)
# ---------------------------------------------------------------------------
def make_feat_kernel(cout_p):
    def feat_kernel(x_ref, w_ref, b_ref, xw_ref, xres_ref):
        xw_all = jnp.dot(
            x_ref[...], w_ref[...], preferred_element_type=jnp.float32
        )
        xw_ref[...] = xw_all[:, :cout_p].astype(xw_ref.dtype)
        xres_ref[...] = xw_all[:, cout_p:] + b_ref[...]  # bias folded here

    return feat_kernel


# ---------------------------------------------------------------------------
# Kernel 2: tiled aggregation  out = A_hat @ XW + XRes
#   grid = (row_tiles, k_tiles), reduction (k) axis last.
#   XW is either resident in VMEM (sliced with pl.ds) or streamed per k-slab.
# ---------------------------------------------------------------------------
def make_agg_kernel(resident_xw, tk):
    def agg_kernel(a_ref, xw_ref, xres_ref, o_ref, acc_ref):
        k = pl.program_id(1)

        @pl.when(k == 0)
        def _():
            acc_ref[...] = jnp.zeros_like(acc_ref)

        if resident_xw:
            start = pl.multiple_of(k * tk, tk)
            xw_blk = xw_ref[pl.ds(start, tk), :]
        else:
            xw_blk = xw_ref[...]

        acc_ref[...] += jnp.dot(
            a_ref[...], xw_blk, preferred_element_type=jnp.float32
        )

        @pl.when(k == pl.num_programs(1) - 1)
        def _():
            # note: zero-padded rows pick up the bias via xres; harmless
            # because the caller slices the output back to [:N].
            o_ref[...] = (acc_ref[...] + xres_ref[...]).astype(o_ref.dtype)

    return agg_kernel


def gcn_forward(a_hat, x, w, w_res, bias, *, compute_dtype=jnp.bfloat16):
    """Single-layer GCN forward.

    a_hat: [N, N] normalized dense adjacency, x: [N, Cin], w: [Cin, Cout],
    w_res: [Cin, Cout], bias: [Cout] or [1, Cout].  Returns [N, Cout].
    """
    N, cin = x.shape
    cout = w.shape[1]
    out_dtype = x.dtype
    isz = jnp.dtype(compute_dtype).itemsize

    # ---- pad to MXU / lane friendly shapes ---------------------------------
    cin_p = _round_up(cin, 128)
    cout_p = _round_up(cout, 128)
    n_pad = _round_up(N, 128)                       # minimal padding
    tm = _pick_tile(n_pad, (512, 256, 128))
    tk = _pick_tile(n_pad, (1024, 512, 256, 128))
    # v7x has 2 TensorCores: make sure the "parallel" row axis has >= 2 tiles
    # whenever the graph is big enough to split.
    if tm == n_pad and n_pad >= 256:
        tm = n_pad // 2
    n_i = n_pad // tm
    n_k = n_pad // tk

    # pad directly in the compute dtype (no extra f32 pad + recast HBM pass)
    a_p = jnp.zeros((n_pad, n_pad), compute_dtype).at[:N, :N].set(
        a_hat.astype(compute_dtype))
    x_p = jnp.zeros((n_pad, cin_p), compute_dtype).at[:N, :cin].set(
        x.astype(compute_dtype))
    w_fused = jnp.zeros((cin_p, 2 * cout_p), compute_dtype)
    w_fused = w_fused.at[:cin, :cout].set(w.astype(compute_dtype))
    w_fused = w_fused.at[:cin, cout_p:cout_p + cout].set(
        w_res.astype(compute_dtype))
    b_p = jnp.zeros((1, cout_p), jnp.float32).at[:, :cout].set(
        bias.reshape(1, -1).astype(jnp.float32))

    # ---- step 1: fused feature transform (hoisted, computed once) ----------
    xw, xres = pl.pallas_call(
        make_feat_kernel(cout_p),
        out_shape=(
            jax.ShapeDtypeStruct((n_pad, cout_p), compute_dtype),  # XW
            jax.ShapeDtypeStruct((n_pad, cout_p), jnp.float32),    # XRes + b
        ),
        grid_spec=pltpu.PrefetchScalarGridSpec(
            num_scalar_prefetch=0,
            grid=(n_i,),
            in_specs=[
                pl.BlockSpec((tm, cin_p), lambda i: (i, 0)),
                pl.BlockSpec((cin_p, 2 * cout_p), lambda i: (0, 0)),
                pl.BlockSpec((1, cout_p), lambda i: (0, 0)),
            ],
            out_specs=[
                pl.BlockSpec((tm, cout_p), lambda i: (i, 0)),
                pl.BlockSpec((tm, cout_p), lambda i: (i, 0)),
            ],
        ),
        compiler_params=pltpu.CompilerParams(
            dimension_semantics=("parallel",),
            vmem_limit_bytes=_VMEM_LIMIT),
    )(x_p, w_fused, b_p)

    # ---- step 2: tiled neighborhood aggregation ----------------------------
    # Keep XW resident in VMEM (DMA'd once) when it fits comfortably;
    # otherwise stream (tk, cout_p) slabs per reduction step.
    resident_xw = (2 * n_pad * cout_p * isz) <= 16 * 1024 * 1024
    if resident_xw:
        xw_spec = pl.BlockSpec((n_pad, cout_p), lambda i, k: (0, 0))
        xw_bytes = n_pad * cout_p * isz
    else:
        xw_spec = pl.BlockSpec((tk, cout_p), lambda i, k: (k, 0))
        xw_bytes = n_i * n_pad * cout_p * isz

    cost = pl.CostEstimate(
        flops=2 * n_pad * n_pad * cout_p + n_pad * cout_p,
        transcendentals=0,
        bytes_accessed=(n_pad * n_pad * isz           # A_hat stream
                        + xw_bytes                    # XW
                        + n_pad * cout_p * 4          # residual (f32)
                        + n_pad * cout_p * jnp.dtype(out_dtype).itemsize))

    y_p = pl.pallas_call(
        make_agg_kernel(resident_xw, tk),
        out_shape=jax.ShapeDtypeStruct((n_pad, cout_p), out_dtype),
        grid_spec=pltpu.PrefetchScalarGridSpec(
            num_scalar_prefetch=0,
            grid=(n_i, n_k),
            in_specs=[
                pl.BlockSpec((tm, tk), lambda i, k: (i, k)),      # A_hat tile
                xw_spec,                                          # XW
                pl.BlockSpec((tm, cout_p), lambda i, k: (i, 0)),  # residual+b
            ],
            out_specs=pl.BlockSpec((tm, cout_p), lambda i, k: (i, 0)),
            scratch_shapes=[pltpu.VMEM((tm, cout_p), jnp.float32)],
        ),
        compiler_params=pltpu.CompilerParams(
            dimension_semantics=("parallel", "arbitrary"),
            vmem_limit_bytes=_VMEM_LIMIT),
        cost_estimate=cost,
    )(a_p, xw, xres)

    return y_p[:N, :cout]


def make_params(key, in_channels, out_channels):
    """Deterministic Glorot-uniform-ish parameter init (synthetic)."""
    k_w, k_r, k_b = jax.random.split(key, 3)
    lim_w = (6.0 / (in_channels + out_channels)) ** 0.5
    w = jax.random.uniform(k_w, (in_channels, out_channels), jnp.float32,
                           -lim_w, lim_w)
    w_res = jax.random.uniform(k_r, (in_channels, out_channels), jnp.float32,
                               -lim_w, lim_w)
    bias = jax.random.uniform(k_b, (1, out_channels), jnp.float32, -0.1, 0.1)
    return w, w_res, bias


def normalize_adjacency(adj):
    """A_hat = D^{-1/2} (A + I) D^{-1/2}  (dense, self-loops added)."""
    N = adj.shape[0]
    a = adj + jnp.eye(N, dtype=adj.dtype)
    deg = jnp.sum(a, axis=1)
    d_inv_sqrt = 1.0 / jnp.sqrt(jnp.maximum(deg, 1e-12))
    return a * d_inv_sqrt[:, None] * d_inv_sqrt[None, :]


if __name__ == "__main__":
    key = jax.random.PRNGKey(0)
    k_adj, k_x, k_param = jax.random.split(key, 3)

    N = 16            # number of graph nodes
    in_channels = 8
    out_channels = 32

    # random symmetric 0/1 adjacency (deterministic)
    raw = jax.random.bernoulli(k_adj, 0.3, (N, N)).astype(jnp.float32)
    adj = jnp.maximum(raw, raw.T)
    a_hat = normalize_adjacency(adj)

    # node features [N, C_in]
    x = jax.random.normal(k_x, (N, in_channels), jnp.float32)

    w, w_res, bias = make_params(k_param, in_channels, out_channels)

    # pure-JAX reference
    y_ref = a_hat @ (x @ w) + x @ w_res + bias

    # float32 path (strict check)
    y_f32 = gcn_forward(a_hat, x, w, w_res, bias, compute_dtype=jnp.float32)
    jax.block_until_ready(y_f32)
    assert y_f32.shape == (N, out_channels)
    assert jnp.allclose(y_f32, y_ref, atol=1e-4, rtol=1e-4)

    # default bf16 fast path (halves A_hat / XW HBM traffic, f32 accumulation)
    y = gcn_forward(a_hat, x, w, w_res, bias)
    jax.block_until_ready(y)
    assert y.shape == (N, out_channels)
    assert jnp.allclose(y.astype(jnp.float32), y_ref, atol=5e-2, rtol=5e-2)

    print("KERNEL_OK")
</pallas_src>

<mosaic_0001>
module attributes {stable_mosaic.version = 11 : i64} {
  func.func @feat_kernel(%arg0: i32, %arg1: memref<128x128xf32, #tpu.memory_space<vmem>>, %arg2: memref<128x256xf32, #tpu.memory_space<vmem>>, %arg3: memref<1x128xf32, #tpu.memory_space<vmem>>, %arg4: memref<128x128xf32, #tpu.memory_space<vmem>>, %arg5: memref<128x128xf32, #tpu.memory_space<vmem>>) attributes {dimension_semantics = [#tpu.dimension_semantics<parallel>], iteration_bounds = array<i64: 1>, scalar_prefetch = 0 : i64, scratch_operands = 0 : i64, tpu.core_type = #tpu.core_type<tc>, window_params = [{transform_indices = @transform_0, window_bounds = array<i64: 128, 128>}, {pipeline_mode = #tpu.pipeline_mode<synchronous>, transform_indices = @transform_1, window_bounds = array<i64: 128, 256>}, {pipeline_mode = #tpu.pipeline_mode<synchronous>, transform_indices = @transform_2, window_bounds = array<i64: 1, 128>}, {transform_indices = @transform_3, window_bounds = array<i64: 128, 128>}, {transform_indices = @transform_4, window_bounds = array<i64: 128, 128>}]} {
    %c0 = arith.constant 0 : index
    %c0_0 = arith.constant 0 : index
    %0 = vector.load %arg1[%c0, %c0_0] : memref<128x128xf32, #tpu.memory_space<vmem>>, vector<128x128xf32>
    %c0_1 = arith.constant 0 : index
    %c0_2 = arith.constant 0 : index
    %1 = vector.load %arg2[%c0_1, %c0_2] : memref<128x256xf32, #tpu.memory_space<vmem>>, vector<128x256xf32>
    %cst = arith.constant dense<0.000000e+00> : vector<128x256xf32>
    %2 = tpu.matmul %0, %1, %cst {dimension_numbers = #tpu.dot_dimension_numbers<[1], [0], [0], [1], [0, 0, 1, 1], [], []>} : vector<128x128xf32>, vector<128x256xf32>, vector<128x256xf32> -> vector<128x256xf32>
    %3 = vector.extract_strided_slice %2 {offsets = [0, 0], sizes = [128, 128], strides = [1, 1]} : vector<128x256xf32> to vector<128x128xf32>
    %c0_3 = arith.constant 0 : index
    %c0_4 = arith.constant 0 : index
    %4 = vector.load %arg4[%c0_3, %c0_4] : memref<128x128xf32, #tpu.memory_space<vmem>>, vector<128x128xf32>
    tpu.vector_store %arg4[%c0_3, %c0_4], %3 {strides = array<i32>} : memref<128x128xf32, #tpu.memory_space<vmem>>, vector<128x128xf32>,
    %5 = vector.extract_strided_slice %2 {offsets = [0, 128], sizes = [128, 128], strides = [1, 1]} : vector<128x256xf32> to vector<128x128xf32>
    %c0_5 = arith.constant 0 : index
    %c0_6 = arith.constant 0 : index
    %6 = vector.load %arg3[%c0_5, %c0_6] : memref<1x128xf32, #tpu.memory_space<vmem>>, vector<1x128xf32>
    %7 = vector.broadcast %6 : vector<1x128xf32> to vector<128x128xf32>
    %8 = arith.addf %5, %7 : vector<128x128xf32>
    %c0_7 = arith.constant 0 : index
    %c0_8 = arith.constant 0 : index
    %9 = vector.load %arg5[%c0_7, %c0_8] : memref<128x128xf32, #tpu.memory_space<vmem>>, vector<128x128xf32>
    tpu.vector_store %arg5[%c0_7, %c0_8], %8 {strides = array<i32>} : memref<128x128xf32, #tpu.memory_space<vmem>>, vector<128x128xf32>,
    return
  }
  func.func @transform_0(%arg0: i32) -> (i32, i32) {
    %c0_i32 = arith.constant 0 : i32
    %c0_i32_0 = arith.constant 0 : i32
    return %arg0, %c0_i32 : i32, i32
  }
  func.func @transform_1(%arg0: i32) -> (i32, i32) {
    %c0_i32 = arith.constant 0 : i32
    %c0_i32_0 = arith.constant 0 : i32
    %c0_i32_1 = arith.constant 0 : i32
    return %c0_i32, %c0_i32_0 : i32, i32
  }
  func.func @transform_2(%arg0: i32) -> (i32, i32) {
    %c0_i32 = arith.constant 0 : i32
    %c0_i32_0 = arith.constant 0 : i32
    %c0_i32_1 = arith.constant 0 : i32
    return %c0_i32, %c0_i32_0 : i32, i32
  }
  func.func @transform_3(%arg0: i32) -> (i32, i32) {
    %c0_i32 = arith.constant 0 : i32
    %c0_i32_0 = arith.constant 0 : i32
    return %arg0, %c0_i32 : i32, i32
  }
  func.func @transform_4(%arg0: i32) -> (i32, i32) {
    %c0_i32 = arith.constant 0 : i32
    %c0_i32_0 = arith.constant 0 : i32
    return %arg0, %c0_i32 : i32, i32
  }
}

</mosaic_0001>

<llo_original>
// kernel: tpu_custom_call.1
$region0: #{tpu_custom_call.1}
  #allocation0 [shape = 'u32[]', space=smem, size = 0x4, offset = 0x4, fixed_abs, tag = 'smem constant byte address 0x4 - core index']
  #allocation1 [shape = 'u32[144,128]{1,0:T(1,128)}', space=vmem, size = 0x12000, scoped, tag = 'internal scratch']
  %s0 = inlined_call_operand.hbm [shape: f32[128,128], index: 0, kind: input, shape index: {}]
  %s1 = inlined_call_operand.hbm [shape: f32[128,256], index: 1, kind: input, shape index: {}]
  %s2 = inlined_call_operand.vmem [shape: f32[1,128], index: 2, kind: input, shape index: {}]
  %s3 = inlined_call_operand.hbm [shape: f32[128,128], index: 3, kind: output, shape index: {0}]
  %s4 = inlined_call_operand.hbm [shape: f32[128,128], index: 4, kind: output, shape index: {1}]
  %5 = xla_tuple %s3, %s4
  %s6 = sld [smem:[#allocation0]]
  $region38: #{tpu_custom_call.1} parent=0
    _
  %s8 = ssub.s32 1, %s6
  %s9 = scalar_select 0, %s8, %s6
  $region1: #{tpu_custom_call.1} parent=0
    #allocation2 [shape = 'u8[65536]{0}', space=vmem, size = 0x10000, scoped, tag = 'input window, operand 0, single buffered']
    #allocation3 [shape = 's32[1]{0}', space=sflag, size = 0x4, scoped, tag = 'scoped memory for tpu_custom_call.1']
    #allocation4 [shape = 's32[1]{0}', space=sflag, size = 0x4, scoped, tag = 'scoped memory for tpu_custom_call.1']
    #allocation5 [shape = 'u8[131072]{0}', space=vmem, size = 0x20000, scoped, tag = 'input window, operand 1, single buffered']
    #allocation6 [shape = 's32[1]{0}', space=sflag, size = 0x4, scoped, tag = 'scoped memory for tpu_custom_call.1']
    #allocation7 [shape = 'u8[65536]{0}', space=vmem, size = 0x10000, scoped, tag = 'output window, operand 0, single buffered']
    #allocation8 [shape = 'u8[65536]{0}', space=vmem, size = 0x10000, scoped, tag = 'output window, operand 1, single buffered']
    #allocation9 [shape = 's32[1]{0}', space=sflag, size = 0x4, scoped, tag = 'scoped memory for tpu_custom_call.1']
    %10 = vsyncpa [#allocation3], 0
    %11 = vsyncpa [#allocation6], 0
    %12 = vsyncpa [#allocation4], 0
    %13 = vsyncpa [#allocation9], 0
    // Predicated region
    $region2: #{tpu_custom_call.1} parent=1 // pred_check
      _
    $region3: #{tpu_custom_call.1} parent=1 // pred_check_branch
      %15 = sbr.rel (0) target = $region5
    $region4: #{tpu_custom_call.1} parent=1 // pred_region
      %s17 = ssub.s32 2048, 2048
      %18 = vsyncadd [#allocation3], %s17
      %s19 = sshll.u32 [#allocation2], 4
      %s20 = int_to_ptr.vmem [resolvable:$true] %s19
      %25 = dma.hbm_to_vmem [thread:$0]  %s0, 2048, %s20, [#allocation3], 128, 128, 8
    $region5: #{tpu_custom_call.1} parent=1 // pred_fallthru
      _
    // Predicated region
    $region6: #{tpu_custom_call.1} parent=1 // pred_check
      _
    $region7: #{tpu_custom_call.1} parent=1 // pred_check_branch
      %27 = sbr.rel (0) target = $region9
    $region8: #{tpu_custom_call.1} parent=1 // pred_region
      %s29 = ssub.s32 4096, 4096
      %30 = vsyncadd [#allocation6], %s29
      %s31 = sshll.u32 [#allocation5], 4
      %s32 = int_to_ptr.vmem [resolvable:$true] %s31
      %37 = dma.hbm_to_vmem [thread:$0]  %s1, 4096, %s32, [#allocation6], 256, 256, 16
    $region9: #{tpu_custom_call.1} parent=1 // pred_fallthru
      _
    // Predicated region
    $region10: #{tpu_custom_call.1} parent=1 // pred_check
      _
    $region11: #{tpu_custom_call.1} parent=1 // pred_check_branch
      %39 = sbr.rel (0) target = $region13
    $region12: #{tpu_custom_call.1} parent=1 // pred_region
      _
    $region13: #{tpu_custom_call.1} parent=1 // pred_fallthru
      _
    // Predicated region
    $region14: #{tpu_custom_call.1} parent=1 // pred_check
      _
    $region15: #{tpu_custom_call.1} parent=1 // pred_check_branch
      %41 = sbr.rel (0) target = $region17
    $region16: #{tpu_custom_call.1} parent=1 // pred_region
      %42 = dma.done [#allocation3], 2048
    $region17: #{tpu_custom_call.1} parent=1 // pred_fallthru
      _
    // Predicated region
    $region18: #{tpu_custom_call.1} parent=1 // pred_check
      _
    $region19: #{tpu_custom_call.1} parent=1 // pred_check_branch
      %44 = sbr.rel (0) target = $region21
    $region20: #{tpu_custom_call.1} parent=1 // pred_region
      %45 = dma.done [#allocation6], 4096
    $region21: #{tpu_custom_call.1} parent=1 // pred_fallthru
      _
    %v46 = vld [vmem:[#allocation2] sm:$0xff]
    %v47 = vld [vmem:[#allocation2 + $0x8] sm:$0xff]
    %v48 = vld [vmem:[#allocation2 + $0x10] sm:$0xff]
    %v49 = vld [vmem:[#allocation2 + $0x18] sm:$0xff]
    %v50 = vld [vmem:[#allocation2 + $0x20] sm:$0xff]
    %v51 = vld [vmem:[#allocation2 + $0x28] sm:$0xff]
    %v52 = vld [vmem:[#allocation2 + $0x30] sm:$0xff]
    %v53 = vld [vmem:[#allocation2 + $0x38] sm:$0xff]
    %v54 = vld [vmem:[#allocation2 + $0x40] sm:$0xff]
    %v55 = vld [vmem:[#allocation2 + $0x48] sm:$0xff]
    %v56 = vld [vmem:[#allocation2 + $0x50] sm:$0xff]
    %v57 = vld [vmem:[#allocation2 + $0x58] sm:$0xff]
    %v58 = vld [vmem:[#allocation2 + $0x60] sm:$0xff]
    %v59 = vld [vmem:[#allocation2 + $0x68] sm:$0xff]
    %v60 = vld [vmem:[#allocation2 + $0x70] sm:$0xff]
    %v61 = vld [vmem:[#allocation2 + $0x78] sm:$0xff]
    %v62 = vld [vmem:[#allocation5] sm:$0xff]
    %v63 = vld [vmem:[#allocation5 + $0x8] sm:$0xff]
    %v64 = vld [vmem:[#allocation5 + $0x10] sm:$0xff]
    %v65 = vld [vmem:[#allocation5 + $0x18] sm:$0xff]
    %v66 = vld [vmem:[#allocation5 + $0x20] sm:$0xff]
    %v67 = vld [vmem:[#allocation5 + $0x28] sm:$0xff]
    %v68 = vld [vmem:[#allocation5 + $0x30] sm:$0xff]
    %v69 = vld [vmem:[#allocation5 + $0x38] sm:$0xff]
    %v70 = vld [vmem:[#allocation5 + $0x40] sm:$0xff]
    %v71 = vld [vmem:[#allocation5 + $0x48] sm:$0xff]
    %v72 = vld [vmem:[#allocation5 + $0x50] sm:$0xff]
    %v73 = vld [vmem:[#allocation5 + $0x58] sm:$0xff]
    %v74 = vld [vmem:[#allocation5 + $0x60] sm:$0xff]
    %v75 = vld [vmem:[#allocation5 + $0x68] sm:$0xff]
    %v76 = vld [vmem:[#allocation5 + $0x70] sm:$0xff]
    %v77 = vld [vmem:[#allocation5 + $0x78] sm:$0xff]
    %v78 = vld [vmem:[#allocation5 + $0x80] sm:$0xff]
    %v79 = vld [vmem:[#allocation5 + $0x88] sm:$0xff]
    %v80 = vld [vmem:[#allocation5 + $0x90] sm:$0xff]
    %v81 = vld [vmem:[#allocation5 + $0x98] sm:$0xff]
    %v82 = vld [vmem:[#allocation5 + $0xa0] sm:$0xff]
    %v83 = vld [vmem:[#allocation5 + $0xa8] sm:$0xff]
    %v84 = vld [vmem:[#allocation5 + $0xb0] sm:$0xff]
    %v85 = vld [vmem:[#allocation5 + $0xb8] sm:$0xff]
    %v86 = vld [vmem:[#allocation5 + $0xc0] sm:$0xff]
    %v87 = vld [vmem:[#allocation5 + $0xc8] sm:$0xff]
    %v88 = vld [vmem:[#allocation5 + $0xd0] sm:$0xff]
    %v89 = vld [vmem:[#allocation5 + $0xd8] sm:$0xff]
    %v90 = vld [vmem:[#allocation5 + $0xe0] sm:$0xff]
    %v91 = vld [vmem:[#allocation5 + $0xe8] sm:$0xff]
    %v92 = vld [vmem:[#allocation5 + $0xf0] sm:$0xff]
    %v93 = vld [vmem:[#allocation5 + $0xf8] sm:$0xff]
    %94 = vmatprep.subr.mxu0 %v63
    %95 = vmatpush1.msra.mxu0 %v62
    %96 = vmatprep.subr.mxu0 %v65
    %97 = vmatpush1.msra.mxu0 %v64
    %98 = vmatprep.subr.mxu0 %v67
    %99 = vmatpush1.msra.mxu0 %v66
    %100 = vmatprep.subr.mxu0 %v69
    %101 = vmatpush1.msra.mxu0 %v68
    %102 = vmatprep.subr.mxu0 %v71
    %103 = vmatpush1.msra.mxu0 %v70
    %104 = vmatprep.subr.mxu0 %v73
    %105 = vmatpush1.msra.mxu0 %v72
    %106 = vmatprep.subr.mxu0 %v75
    %107 = vmatpush1.msra.mxu0 %v74
    %108 = vmatprep.subr.mxu0 %v77
    %109 = vmatpush1.msra.mxu0 %v76
    %110 = vmatprep.subr.mxu0 %v79
    %111 = vmatpush1.msra.mxu0 %v78
    %112 = vmatprep.subr.mxu0 %v81
    %113 = vmatpush1.msra.mxu0 %v80
    %114 = vmatprep.subr.mxu0 %v83
    %115 = vmatpush1.msra.mxu0 %v82
    %116 = vmatprep.subr.mxu0 %v85
    %117 = vmatpush1.msra.mxu0 %v84
    %118 = vmatprep.subr.mxu0 %v87
    %119 = vmatpush1.msra.mxu0 %v86
    %120 = vmatprep.subr.mxu0 %v89
    %121 = vmatpush1.msra.mxu0 %v88
    %122 = vmatprep.subr.mxu0 %v91
    %123 = vmatpush1.msra.mxu0 %v90
    %124 = vmatprep.subr.mxu0 %v93
    %125 = vmatpush1.msra.mxu0 %v92
    %126 = vmatprep.subr.mxu0 0.0
    %127 = vmatpush1.msra.mxu0 0.0
    %128 = vmatprep.subr.mxu0 0.0
    %129 = vmatpush1.msra.mxu0 0.0
    %130 = vmatprep.subr.mxu0 0.0
    %131 = vmatpush1.msra.mxu0 0.0
    %132 = vmatprep.subr.mxu0 0.0
    %133 = vmatpush1.msra.mxu0 0.0
    %134 = vmatprep.subr.mxu0 0.0
    %135 = vmatpush1.msra.mxu0 0.0
    %136 = vmatprep.subr.mxu0 0.0
    %137 = vmatpush1.msra.mxu0 0.0
    %138 = vmatprep.subr.mxu0 0.0
    %139 = vmatpush1.msra.mxu0 0.0
    %140 = vmatprep.subr.mxu0 0.0
    %141 = vmatpush1.msra.mxu0 0.0
    %142 = vmatprep.subr.mxu0 0.0
    %143 = vmatpush1.msra.mxu0 0.0
    %144 = vmatprep.subr.mxu0 0.0
    %145 = vmatpush1.msra.mxu0 0.0
    %146 = vmatprep.subr.mxu0 0.0
    %147 = vmatpush1.msra.mxu0 0.0
    %148 = vmatprep.subr.mxu0 0.0
    %149 = vmatpush1.msra.mxu0 0.0
    %150 = vmatprep.subr.mxu0 0.0
    %151 = vmatpush1.msra.mxu0 0.0
    %152 = vmatprep.subr.mxu0 0.0
    %153 = vmatpush1.msra.mxu0 0.0
    %154 = vmatprep.subr.mxu0 0.0
    %155 = vmatpush1.msra.mxu0 0.0
    %156 = vmatprep.subr.mxu0 0.0
    %157 = vmatpush1.msra.mxu0 0.0
    %158 = vmatprep.mubr.f32.mxu0 0.0
    %159 = vmatmul.mubr.f32.gmra.mrb[0].mxu0 %v46
    %v160 = vpop.f32.mrb[0].mxu0
    %v161 = vadd.f32 0.0, %v160
    %v162 = vpop.f32.mrb[0].mxu0
    %v163 = vadd.f32 0.0, %v162
    %164 = vmatprep.mubr.f32.mxu0 0.0
    %165 = vmatmul.mubr.f32.gmra.mrb[0].mxu0 %v47
    %v166 = vpop.f32.mrb[0].mxu0
    %v167 = vadd.f32 0.0, %v166
    %v168 = vpop.f32.mrb[0].mxu0
    %v169 = vadd.f32 0.0, %v168
    %170 = vmatprep.mubr.f32.mxu0 0.0
    %171 = vmatmul.mubr.f32.gmra.mrb[0].mxu0 %v48
    %v172 = vpop.f32.mrb[0].mxu0
    %v173 = vadd.f32 0.0, %v172
    %v174 = vpop.f32.mrb[0].mxu0
    %v175 = vadd.f32 0.0, %v174
    %176 = vmatprep.mubr.f32.mxu0 0.0
    %177 = vmatmul.mubr.f32.gmra.mrb[0].mxu0 %v49
    %v178 = vpop.f32.mrb[0].mxu0
    %v179 = vadd.f32 0.0, %v178
    %v180 = vpop.f32.mrb[0].mxu0
    %v181 = vadd.f32 0.0, %v180
    %182 = vmatprep.mubr.f32.mxu0 0.0
    %183 = vmatmul.mubr.f32.gmra.mrb[0].mxu0 %v50
    %v184 = vpop.f32.mrb[0].mxu0
    %v185 = vadd.f32 0.0, %v184
    %v186 = vpop.f32.mrb[0].mxu0
    %v187 = vadd.f32 0.0, %v186
    %188 = vmatprep.mubr.f32.mxu0 0.0
    %189 = vmatmul.mubr.f32.gmra.mrb[0].mxu0 %v51
    %v190 = vpop.f32.mrb[0].mxu0
    %v191 = vadd.f32 0.0, %v190
    %v192 = vpop.f32.mrb[0].mxu0
    %v193 = vadd.f32 0.0, %v192
    %194 = vmatprep.mubr.f32.mxu0 0.0
    %195 = vmatmul.mubr.f32.gmra.mrb[0].mxu0 %v52
    %v196 = vpop.f32.mrb[0].mxu0
    %v197 = vadd.f32 0.0, %v196
    %v198 = vpop.f32.mrb[0].mxu0
    %v199 = vadd.f32 0.0, %v198
    %200 = vmatprep.mubr.f32.mxu0 0.0
    %201 = vmatmul.mubr.f32.gmra.mrb[0].mxu0 %v53
    %v202 = vpop.f32.mrb[0].mxu0
    %v203 = vadd.f32 0.0, %v202
    %v204 = vpop.f32.mrb[0].mxu0
    %v205 = vadd.f32 0.0, %v204
    %206 = vmatprep.mubr.f32.mxu0 0.0
    %207 = vmatmul.mubr.f32.gmra.mrb[0].mxu0 %v54
    %v208 = vpop.f32.mrb[0].mxu0
    %v209 = vadd.f32 0.0, %v208
    %v210 = vpop.f32.mrb[0].mxu0
    %v211 = vadd.f32 0.0, %v210
    %212 = vmatprep.mubr.f32.mxu0 0.0
    %213 = vmatmul.mubr.f32.gmra.mrb[0].mxu0 %v55
    %v214 = vpop.f32.mrb[0].mxu0
    %v215 = vadd.f32 0.0, %v214
    %v216 = vpop.f32.mrb[0].mxu0
    %v217 = vadd.f32 0.0, %v216
    %218 = vmatprep.mubr.f32.mxu0 0.0
    %219 = vmatmul.mubr.f32.gmra.mrb[0].mxu0 %v56
    %v220 = vpop.f32.mrb[0].mxu0
    %v221 = vadd.f32 0.0, %v220
    %v222 = vpop.f32.mrb[0].mxu0
    %v223 = vadd.f32 0.0, %v222
    %224 = vmatprep.mubr.f32.mxu0 0.0
    %225 = vmatmul.mubr.f32.gmra.mrb[0].mxu0 %v57
    %v226 = vpop.f32.mrb[0].mxu0
    %v227 = vadd.f32 0.0, %v226
    %v228 = vpop.f32.mrb[0].mxu0
    %v229 = vadd.f32 0.0, %v228
    %230 = vmatprep.mubr.f32.mxu0 0.0
    %231 = vmatmul.mubr.f32.gmra.mrb[0].mxu0 %v58
    %v232 = vpop.f32.mrb[0].mxu0
    %v233 = vadd.f32 0.0, %v232
    %v234 = vpop.f32.mrb[0].mxu0
    %v235 = vadd.f32 0.0, %v234
    %236 = vmatprep.mubr.f32.mxu0 0.0
    %237 = vmatmul.mubr.f32.gmra.mrb[0].mxu0 %v59
    %v238 = vpop.f32.mrb[0].mxu0
    %v239 = vadd.f32 0.0, %v238
    %v240 = vpop.f32.mrb[0].mxu0
    %v241 = vadd.f32 0.0, %v240
    %242 = vmatprep.mubr.f32.mxu0 0.0
    %243 = vmatmul.mubr.f32.gmra.mrb[0].mxu0 %v60
    %v244 = vpop.f32.mrb[0].mxu0
    %v245 = vadd.f32 0.0, %v244
    %v246 = vpop.f32.mrb[0].mxu0
    %v247 = vadd.f32 0.0, %v246
    %248 = vmatprep.mubr.f32.mxu0 0.0
    %249 = vmatmul.mubr.f32.gmra.mrb[0].mxu0 %v61
    %v250 = vpop.f32.mrb[0].mxu0
    %v251 = vadd.f32 0.0, %v250
    %v252 = vpop.f32.mrb[0].mxu0
    %v253 = vadd.f32 0.0, %v252
    %254 = vdwg.mxu0
    %255 = vst [vmem:[#allocation7] sm:$0xff] %v161
    %256 = vst [vmem:[#allocation7 + $0x8] sm:$0xff] %v167
    %257 = vst [vmem:[#allocation7 + $0x10] sm:$0xff] %v173
    %258 = vst [vmem:[#allocation7 + $0x18] sm:$0xff] %v179
    %259 = vst [vmem:[#allocation7 + $0x20] sm:$0xff] %v185
    %260 = vst [vmem:[#allocation7 + $0x28] sm:$0xff] %v191
    %261 = vst [vmem:[#allocation7 + $0x30] sm:$0xff] %v197
    %262 = vst [vmem:[#allocation7 + $0x38] sm:$0xff] %v203
    %263 = vst [vmem:[#allocation7 + $0x40] sm:$0xff] %v209
    %264 = vst [vmem:[#allocation7 + $0x48] sm:$0xff] %v215
    %265 = vst [vmem:[#allocation7 + $0x50] sm:$0xff] %v221
    %266 = vst [vmem:[#allocation7 + $0x58] sm:$0xff] %v227
    %267 = vst [vmem:[#allocation7 + $0x60] sm:$0xff] %v233
    %268 = vst [vmem:[#allocation7 + $0x68] sm:$0xff] %v239
    %269 = vst [vmem:[#allocation7 + $0x70] sm:$0xff] %v245
    %270 = vst [vmem:[#allocation7 + $0x78] sm:$0xff] %v251
    %v271 = vld [vmem:[%s2] sm:$0x1]
    %v273 = vlaneseq
    %v274 = vshrl.u32 %v273, 7
    %v275 = vsub.s32 0, %v274
    %v276 = vrot.slane %v271, %v275
    %v278 = vadd.f32 %v163, %v276
    %v279 = vadd.f32 %v169, %v276
    %v280 = vadd.f32 %v175, %v276
    %v281 = vadd.f32 %v181, %v276
    %v282 = vadd.f32 %v187, %v276
    %v283 = vadd.f32 %v193, %v276
    %v284 = vadd.f32 %v199, %v276
    %v285 = vadd.f32 %v205, %v276
    %v286 = vadd.f32 %v211, %v276
    %v287 = vadd.f32 %v217, %v276
    %v288 = vadd.f32 %v223, %v276
    %v289 = vadd.f32 %v229, %v276
    %v290 = vadd.f32 %v235, %v276
    %v291 = vadd.f32 %v241, %v276
    %v292 = vadd.f32 %v247, %v276
    %v293 = vadd.f32 %v253, %v276
    %294 = vst [vmem:[#allocation8] sm:$0xff] %v278
    %295 = vst [vmem:[#allocation8 + $0x8] sm:$0xff] %v279
    %296 = vst [vmem:[#allocation8 + $0x10] sm:$0xff] %v280
    %297 = vst [vmem:[#allocation8 + $0x18] sm:$0xff] %v281
    %298 = vst [vmem:[#allocation8 + $0x20] sm:$0xff] %v282
    %299 = vst [vmem:[#allocation8 + $0x28] sm:$0xff] %v283
    %300 = vst [vmem:[#allocation8 + $0x30] sm:$0xff] %v284
    %301 = vst [vmem:[#allocation8 + $0x38] sm:$0xff] %v285
    %302 = vst [vmem:[#allocation8 + $0x40] sm:$0xff] %v286
    %303 = vst [vmem:[#allocation8 + $0x48] sm:$0xff] %v287
    %304 = vst [vmem:[#allocation8 + $0x50] sm:$0xff] %v288
    %305 = vst [vmem:[#allocation8 + $0x58] sm:$0xff] %v289
    %306 = vst [vmem:[#allocation8 + $0x60] sm:$0xff] %v290
    %307 = vst [vmem:[#allocation8 + $0x68] sm:$0xff] %v291
    %308 = vst [vmem:[#allocation8 + $0x70] sm:$0xff] %v292
    %309 = vst [vmem:[#allocation8 + $0x78] sm:$0xff] %v293
    // Predicated region
    $region22: #{tpu_custom_call.1} parent=1 // pred_check
      _
    $region23: #{tpu_custom_call.1} parent=1 // pred_check_branch
      %311 = sbr.rel (0) target = $region25
    $region24: #{tpu_custom_call.1} parent=1 // pred_region
      %s313 = ssub.s32 2048, 2048
      %314 = vsyncadd [#allocation4], %s313
      %s315 = sshll.u32 [#allocation7], 4
      %s316 = int_to_ptr.vmem [resolvable:$true] %s315
      %321 = dma.vmem_to_hbm [thread:$0]  %s316, 2048, %s3, [#allocation4], 128, 128, 8
    $region25: #{tpu_custom_call.1} parent=1 // pred_fallthru
      _
    // Predicated region
    $region26: #{tpu_custom_call.1} parent=1 // pred_check
      _
    $region27: #{tpu_custom_call.1} parent=1 // pred_check_branch
      %323 = sbr.rel (0) target = $region29
    $region28: #{tpu_custom_call.1} parent=1 // pred_region
      %s325 = ssub.s32 2048, 2048
      %326 = vsyncadd [#allocation9], %s325
      %s327 = sshll.u32 [#allocation8], 4
      %s328 = int_to_ptr.vmem [resolvable:$true] %s327
      %333 = dma.vmem_to_hbm [thread:$0]  %s328, 2048, %s4, [#allocation9], 128, 128, 8
    $region29: #{tpu_custom_call.1} parent=1 // pred_fallthru
      _
    // Predicated region
    $region30: #{tpu_custom_call.1} parent=1 // pred_check
      _
    $region31: #{tpu_custom_call.1} parent=1 // pred_check_branch
      %335 = sbr.rel (0) target = $region33
    $region32: #{tpu_custom_call.1} parent=1 // pred_region
      %336 = dma.done [#allocation4], 2048
    $region33: #{tpu_custom_call.1} parent=1 // pred_fallthru
      _
    // Predicated region
    $region34: #{tpu_custom_call.1} parent=1 // pred_check
      _
    $region35: #{tpu_custom_call.1} parent=1 // pred_check_branch
      %338 = sbr.rel (0) target = $region37
    $region36: #{tpu_custom_call.1} parent=1 // pred_region
      %339 = dma.done [#allocation9], 2048
    $region37: #{tpu_custom_call.1} parent=1 // pred_fallthru
      _
    %340 = vsyncpa [#allocation3], 1
    %341 = vsyncpa [#allocation6], 1
    %342 = vsyncpa [#allocation4], 1
    %343 = vsyncpa [#allocation9], 1

</llo_original>
